<compile_context>
chip_gen: v5e
topology: v5e:2x2
jax: 0.10.0
libtpu: 0.0.40
codegen_flags: <defaults>
</compile_context>

<pallas_src>
import functools

import jax
import jax.numpy as jnp
from jax.experimental import pallas as pl
from jax.experimental.pallas import tpu as pltpu


# Embedding tables at or below this size are made VMEM-resident and gathered with
# in-kernel dynamic row loads (each HBM-row DMA here would move only H*4 = 128 B,
# far below efficient DMA size).  Larger tables use the HBM DMA-gather fallback.
# Kept well under per-gen scoped-VMEM defaults (v5e 16 MiB, v6e 32 MiB, v7x 32 MiB).
_VMEM_TABLE_BUDGET_BYTES = 4 * 1024 * 1024


def _compute_h_instance(x_ref, wd_ref, wu_ref, vec_ref, share_ref, itemp_ref):
    """query_adapter + merge_instance_information. Returns B arrays of [S, H] f32."""
    B, H = x_ref.shape
    M = wd_ref.shape[1]
    E, S, _ = share_ref.shape

    # ---- query adapter: LayerNorm(up_linear(SiLU(down_linear(x)))) ----------
    x = x_ref[...]                                                # [B, H]
    h = jnp.dot(x, wd_ref[...], preferred_element_type=jnp.float32)
    h = h + vec_ref[0:1, :M]                                      # + b_down
    h = h * jax.nn.sigmoid(h)                                     # SiLU
    y = jnp.dot(h, wu_ref[...], preferred_element_type=jnp.float32)
    y = y + vec_ref[1:2, :H]                                      # + b_up
    mean = jnp.mean(y, axis=-1, keepdims=True)
    var = jnp.mean(jnp.square(y - mean), axis=-1, keepdims=True)
    q = (y - mean) * jax.lax.rsqrt(var + 1e-5)                    # LayerNorm eps=1e-5
    q = q * vec_ref[2:3, :H] + vec_ref[3:4, :H]                   # gamma, beta  [B, H]

    # Fold 1/temp into q ONCE; it rides into the score matmuls for free.
    q = q * itemp_ref[0]
    qT = q.T                                                      # [H, B], one small transpose

    # ---- merge_instance_information ------------------------------------------
    #   scores[e][s,b] = sum_h share[e,s,h] * q[b,h] / temp      (MXU, not XLU)
    #   prob           = softmax over e  (elementwise across the E [S,B] arrays)
    #   values[b][s,h] = sum_e prob[e][s,b] * share[e,s,h]
    # TODO(synk): at production E*S, replace the E small dots with one fused
    # [E*S,H] x [H,B] matmul.
    scores = [jnp.dot(share_ref[e], qT, preferred_element_type=jnp.float32)
              for e in range(E)]                                  # E x [S, B]
    m = scores[0]
    for sc in scores[1:]:
        m = jnp.maximum(m, sc)
    p = [jnp.exp(sc - m) for sc in scores]
    denom = p[0]
    for pe in p[1:]:
        denom = denom + pe
    inv_denom = pl.reciprocal(denom, approx=False)                # EUP; exact parity
    prob = [pe * inv_denom for pe in p]                           # softmax over E

    vbs = []
    for b in range(B):                                            # static, small B
        vb = prob[0][:, b:b + 1] * share_ref[0]                   # [S,1] * [S,H]
        for e in range(1, E):
            vb = vb + prob[e][:, b:b + 1] * share_ref[e]
        vbs.append(vb)                                            # [S, H] f32
    return vbs


def _softemb_kernel_vmem(tok_ref, itemp_ref, x_ref, wd_ref, wu_ref, vec_ref,
                         share_ref, wte_ref, out_ref, *, t_keep):
    """Primary path: embedding table resident in VMEM, gathered with row loads."""
    S = share_ref.shape[1]
    B = x_ref.shape[0]

    # ---- 1) token-row gather straight out of the VMEM-resident table --------
    for b in range(B):
        for t in range(t_keep):
            tok = tok_ref[b * t_keep + t]                          # SMEM scalar id
            row = wte_ref[pl.ds(tok, 1), :]                        # [1, H] dyn row
            out_ref[b, pl.ds(S + t, 1), :] = row.astype(out_ref.dtype)

    # ---- 2) adapter + attention ----------------------------------------------
    vbs = _compute_h_instance(x_ref, wd_ref, wu_ref, vec_ref, share_ref, itemp_ref)
    for b in range(B):
        out_ref[b, :S, :] = vbs[b].astype(out_ref.dtype)


def _softemb_kernel_hbm(tok_ref, itemp_ref, x_ref, wd_ref, wu_ref, vec_ref,
                        share_ref, wte_hbm, out_ref, sems, *, t_keep):
    """Fallback path for large tables: per-row HBM->VMEM DMA gather.

    Uses only 2 DMA semaphores: sem[0] for copies whose destination rows share
    the first 8-sublane tile with the computed H_instance rows (S % 8 != 0),
    sem[1] for all others.  The sem[0] copies are waited on before the
    H_instance store; the rest overlap the compute and drain at the end.
    """
    S = share_ref.shape[1]
    B = x_ref.shape[0]
    n_shared = min(t_keep, (-S) % 8)   # rows S .. S+n_shared-1 share H_instance's tile

    shared_copies, other_copies = [], []
    for b in range(B):
        for t in range(t_keep):
            tok = tok_ref[b * t_keep + t]                          # SMEM scalar id
            shares_tile = t < n_shared
            cp = pltpu.make_async_copy(
                wte_hbm.at[pl.ds(tok, 1)],                         # [1, H] HBM row
                out_ref.at[b, pl.ds(S + t, 1)],                    # [1, H] VMEM row
                sems.at[0] if shares_tile else sems.at[1])
            cp.start()
            (shared_copies if shares_tile else other_copies).append(cp)

    vbs = _compute_h_instance(x_ref, wd_ref, wu_ref, vec_ref, share_ref, itemp_ref)

    for cp in shared_copies:       # must land before we store into the same tile
        cp.wait()
    for b in range(B):
        out_ref[b, :S, :] = vbs[b].astype(out_ref.dtype)
    for cp in other_copies:        # drain before the kernel's output write-back
        cp.wait()


@functools.partial(jax.jit,
                   static_argnames=("n_tokens", "bias", "num_share_tokens",
                                    "share_expand", "force_hbm_gather"))
def softembv2_forward(params, x, tokens, *, n_tokens, bias, num_share_tokens,
                      share_expand, temp, force_hbm_gather=False):
    B, H = x.shape
    T = tokens.shape[1]
    S, E = num_share_tokens, share_expand
    M = params["qa_w_down"].shape[1]
    t_keep = bias + (T - bias - n_tokens)
    assert t_keep >= 0, "bias + n_tokens exceeds the sequence length"
    s_total = S + t_keep

    # Pack the small per-channel vectors into a single [4, max(M,H)] VMEM input.
    P = max(M, H)
    vecs = jnp.zeros((4, P), jnp.float32)
    vecs = vecs.at[0, :M].set(params["qa_b_down"].astype(jnp.float32))
    vecs = vecs.at[1, :H].set(params["qa_b_up"].astype(jnp.float32))
    vecs = vecs.at[2, :H].set(params["qa_gamma"].astype(jnp.float32))
    vecs = vecs.at[3, :H].set(params["qa_beta"].astype(jnp.float32))

    # share_emb [S, E*H] -> [S, E, H] -> [E, S, H]  (cheap layout plumbing in XLA)
    share_esh = params["share_emb"].reshape(S, E, H).transpose(1, 0, 2)

    # Token ids of the kept positions: [:, :bias] ++ [:, bias+n_tokens:], flattened
    # to 1-D for SMEM (2-D SMEM pads to (8,128) words).
    tok_keep = jnp.concatenate(
        [tokens[:, :bias], tokens[:, bias + n_tokens:]], axis=1).astype(jnp.int32)
    tok_flat = tok_keep.reshape(-1)
    if t_keep == 0:
        tok_flat = jnp.zeros((1,), jnp.int32)   # dummy; gather loop is empty

    # temp is a runtime scalar (no recompile across get_temp() values).
    inv_temp = (1.0 / jnp.asarray(temp, jnp.float32)).reshape(1)

    wte = params["wte"]
    wte_bytes = wte.size * wte.dtype.itemsize
    use_vmem_gather = (not force_hbm_gather) and wte_bytes <= _VMEM_TABLE_BUDGET_BYTES

    smem = pltpu.MemorySpace.SMEM
    vmem = pltpu.MemorySpace.VMEM
    common_in_specs = [
        pl.BlockSpec(memory_space=smem),    # token ids     [B*t_keep] int32 (1-D)
        pl.BlockSpec(memory_space=smem),    # 1/temp        [1] f32      (1-D)
        pl.BlockSpec(memory_space=vmem),    # x             [B, H]
        pl.BlockSpec(memory_space=vmem),    # w_down        [H, M]
        pl.BlockSpec(memory_space=vmem),    # w_up          [M, H]
        pl.BlockSpec(memory_space=vmem),    # packed biases/gamma/beta [4, P]
        pl.BlockSpec(memory_space=vmem),    # share         [E, S, H]
    ]
    out_shape = jax.ShapeDtypeStruct((B, s_total, H), x.dtype)
    args = (tok_flat, inv_temp, x, params["qa_w_down"], params["qa_w_up"],
            vecs, share_esh, wte)

    if use_vmem_gather:
        kernel = functools.partial(_softemb_kernel_vmem, t_keep=t_keep)
        return pl.pallas_call(
            kernel,
            out_shape=out_shape,
            in_specs=common_in_specs + [pl.BlockSpec(memory_space=vmem)],  # wte in VMEM
            out_specs=pl.BlockSpec(memory_space=vmem),
        )(*args)
    else:
        assert wte.dtype == x.dtype  # rows are DMA'd bit-for-bit into the output
        kernel = functools.partial(_softemb_kernel_hbm, t_keep=t_keep)
        return pl.pallas_call(
            kernel,
            out_shape=out_shape,
            in_specs=common_in_specs + [pl.BlockSpec(memory_space=pl.ANY)],  # wte in HBM
            out_specs=pl.BlockSpec(memory_space=vmem),
            scratch_shapes=[pltpu.SemaphoreType.DMA((2,))],
        )(*args)


# ---------------------------------------------------------------------------
# Pure-JAX reference (mirrors the PyTorch math) for verification
# ---------------------------------------------------------------------------
def reference_forward(params, x, tokens, *, n_tokens, bias, num_share_tokens,
                      share_expand, temp):
    B, H = x.shape
    h = x @ params["qa_w_down"] + params["qa_b_down"]
    h = h * jax.nn.sigmoid(h)
    y = h @ params["qa_w_up"] + params["qa_b_up"]
    mu = y.mean(-1, keepdims=True)
    var = ((y - mu) ** 2).mean(-1, keepdims=True)
    q = (y - mu) / jnp.sqrt(var + 1e-5) * params["qa_gamma"] + params["qa_beta"]

    share = params["share_emb"].reshape(1, num_share_tokens, share_expand, H)
    ins = q.reshape(B, 1, 1, H)
    scores = jnp.matmul(ins, jnp.swapaxes(share, -1, -2))                    # [B, S, 1, E]
    prob = jax.nn.softmax(scores / temp, axis=-1)
    values = jnp.matmul(prob, share)                                         # [B, S, 1, H]
    H_instance = values.reshape(B, num_share_tokens, H)

    wte = params["wte"]
    left = jnp.take(wte, tokens[:, :bias], axis=0)
    right = jnp.take(wte, tokens[:, bias + n_tokens:], axis=0)
    return jnp.concatenate([H_instance, left, right], axis=1)


if __name__ == "__main__":
    # Small, deterministic config
    B, T, H = 2, 20, 32
    n_tokens = 10
    num_share_tokens = 5
    share_expand = 5
    bias = 1
    down_dim = 16
    V_old, n_datasets = 50, 2
    V_new = V_old + n_datasets * n_tokens
    # get_temp() at step_cnt = 0: 0.1 + 40 * 1.0
    temp = 0.1 + 40.0

    key = jax.random.PRNGKey(0)
    ks = jax.random.split(key, 9)

    params = {
        "wte": jax.random.normal(ks[0], (V_new, H), jnp.float32) * 0.02,
        # share_emb init: uniform(0,1) * 0.5, shape [S, E*H]
        "share_emb": jax.random.uniform(ks[1], (num_share_tokens, share_expand * H),
                                        jnp.float32) * 0.5,
        # query adapter (P_Adapter(H, down_dim, H)); weights stored [in, out]
        "qa_w_down": jax.random.normal(ks[2], (H, down_dim), jnp.float32) * (1.0 / jnp.sqrt(H)),
        "qa_b_down": jax.random.normal(ks[3], (down_dim,), jnp.float32) * 0.01,
        "qa_w_up": jax.random.normal(ks[4], (down_dim, H), jnp.float32) * (1.0 / jnp.sqrt(down_dim)),
        "qa_b_up": jax.random.normal(ks[5], (H,), jnp.float32) * 0.01,
        "qa_gamma": jnp.ones((H,), jnp.float32),
        "qa_beta": jnp.zeros((H,), jnp.float32),
    }

    x = jax.random.normal(ks[6], (B, H), jnp.float32)          # instance rep from set_x
    tokens = jax.random.randint(ks[7], (B, T), 0, V_old, jnp.int32)

    ref = reference_forward(params, x, tokens, n_tokens=n_tokens, bias=bias,
                            num_share_tokens=num_share_tokens,
                            share_expand=share_expand, temp=temp)
    ref = jax.block_until_ready(ref)
    expected_shape = (B, num_share_tokens + bias + (T - bias - n_tokens), H)

    # Primary path: VMEM-resident embedding table (fits well under budget).
    out = softembv2_forward(params, x, tokens, n_tokens=n_tokens, bias=bias,
                            num_share_tokens=num_share_tokens,
                            share_expand=share_expand, temp=temp)
    out = jax.block_until_ready(out)
    assert out.shape == expected_shape, (out.shape, expected_shape)
    assert bool(jnp.all(jnp.isfinite(out)))
    assert bool(jnp.allclose(out, ref, atol=5e-3, rtol=5e-3))

    # Fallback path (large-vocab tables): HBM DMA gather, forced here to verify.
    out_hbm = softembv2_forward(params, x, tokens, n_tokens=n_tokens, bias=bias,
                                num_share_tokens=num_share_tokens,
                                share_expand=share_expand, temp=temp,
                                force_hbm_gather=True)
    out_hbm = jax.block_until_ready(out_hbm)
    assert out_hbm.shape == expected_shape, (out_hbm.shape, expected_shape)
    assert bool(jnp.all(jnp.isfinite(out_hbm)))
    assert bool(jnp.allclose(out_hbm, ref, atol=5e-3, rtol=5e-3))

    print("KERNEL_OK")
</pallas_src>

<mosaic_0001>
module attributes {stable_mosaic.version = 11 : i64} {
  func.func @_softemb_kernel_vmem(%arg0: memref<20xi32, #tpu.memory_space<smem>>, %arg1: memref<1xf32, #tpu.memory_space<smem>>, %arg2: memref<2x32xf32, #tpu.memory_space<vmem>>, %arg3: memref<32x16xf32, #tpu.memory_space<vmem>>, %arg4: memref<16x32xf32, #tpu.memory_space<vmem>>, %arg5: memref<4x32xf32, #tpu.memory_space<vmem>>, %arg6: memref<5x5x32xf32, #tpu.memory_space<vmem>>, %arg7: memref<70x32xf32, #tpu.memory_space<vmem>>, %arg8: memref<2x15x32xf32, #tpu.memory_space<vmem>>) attributes {dimension_semantics = [], scalar_prefetch = 0 : i64, scratch_operands = 0 : i64, tpu.core_type = #tpu.core_type<tc>} {
    %c0 = arith.constant 0 : index
    %0 = memref.load %arg0[%c0] : memref<20xi32, #tpu.memory_space<smem>>
    %1 = arith.index_cast %0 : i32 to index
    %c0_0 = arith.constant 0 : index
    %2 = vector.load %arg7[%1, %c0_0] : memref<70x32xf32, #tpu.memory_space<vmem>>, vector<1x32xf32>
    %c0_1 = arith.constant 0 : index
    %c5 = arith.constant 5 : index
    %c0_2 = arith.constant 0 : index
    %3 = vector.load %arg8[%c0_1, %c5, %c0_2] : memref<2x15x32xf32, #tpu.memory_space<vmem>>, vector<1x1x32xf32>
    %4 = vector.shape_cast %3 : vector<1x1x32xf32> to vector<1x32xf32>
    %5 = vector.shape_cast %2 : vector<1x32xf32> to vector<1x1x32xf32>
    tpu.vector_store %arg8[%c0_1, %c5, %c0_2], %5 {strides = array<i32>} : memref<2x15x32xf32, #tpu.memory_space<vmem>>, vector<1x1x32xf32>,
    %c1 = arith.constant 1 : index
    %6 = memref.load %arg0[%c1] : memref<20xi32, #tpu.memory_space<smem>>
    %7 = arith.index_cast %6 : i32 to index
    %c0_3 = arith.constant 0 : index
    %8 = vector.load %arg7[%7, %c0_3] : memref<70x32xf32, #tpu.memory_space<vmem>>, vector<1x32xf32>
    %c0_4 = arith.constant 0 : index
    %c6 = arith.constant 6 : index
    %c0_5 = arith.constant 0 : index
    %9 = vector.load %arg8[%c0_4, %c6, %c0_5] : memref<2x15x32xf32, #tpu.memory_space<vmem>>, vector<1x1x32xf32>
    %10 = vector.shape_cast %9 : vector<1x1x32xf32> to vector<1x32xf32>
    %11 = vector.shape_cast %8 : vector<1x32xf32> to vector<1x1x32xf32>
    tpu.vector_store %arg8[%c0_4, %c6, %c0_5], %11 {strides = array<i32>} : memref<2x15x32xf32, #tpu.memory_space<vmem>>, vector<1x1x32xf32>,
    %c2 = arith.constant 2 : index
    %12 = memref.load %arg0[%c2] : memref<20xi32, #tpu.memory_space<smem>>
    %13 = arith.index_cast %12 : i32 to index
    %c0_6 = arith.constant 0 : index
    %14 = vector.load %arg7[%13, %c0_6] : memref<70x32xf32, #tpu.memory_space<vmem>>, vector<1x32xf32>
    %c0_7 = arith.constant 0 : index
    %c7 = arith.constant 7 : index
    %c0_8 = arith.constant 0 : index
    %15 = vector.load %arg8[%c0_7, %c7, %c0_8] : memref<2x15x32xf32, #tpu.memory_space<vmem>>, vector<1x1x32xf32>
    %16 = vector.shape_cast %15 : vector<1x1x32xf32> to vector<1x32xf32>
    %17 = vector.shape_cast %14 : vector<1x32xf32> to vector<1x1x32xf32>
    tpu.vector_store %arg8[%c0_7, %c7, %c0_8], %17 {strides = array<i32>} : memref<2x15x32xf32, #tpu.memory_space<vmem>>, vector<1x1x32xf32>,
    %c3 = arith.constant 3 : index
    %18 = memref.load %arg0[%c3] : memref<20xi32, #tpu.memory_space<smem>>
    %19 = arith.index_cast %18 : i32 to index
    %c0_9 = arith.constant 0 : index
    %20 = vector.load %arg7[%19, %c0_9] : memref<70x32xf32, #tpu.memory_space<vmem>>, vector<1x32xf32>
    %c0_10 = arith.constant 0 : index
    %c8 = arith.constant 8 : index
    %c0_11 = arith.constant 0 : index
    %21 = vector.load %arg8[%c0_10, %c8, %c0_11] : memref<2x15x32xf32, #tpu.memory_space<vmem>>, vector<1x1x32xf32>
    %22 = vector.shape_cast %21 : vector<1x1x32xf32> to vector<1x32xf32>
    %23 = vector.shape_cast %20 : vector<1x32xf32> to vector<1x1x32xf32>
    tpu.vector_store %arg8[%c0_10, %c8, %c0_11], %23 {strides = array<i32>} : memref<2x15x32xf32, #tpu.memory_space<vmem>>, vector<1x1x32xf32>,
    %c4 = arith.constant 4 : index
    %24 = memref.load %arg0[%c4] : memref<20xi32, #tpu.memory_space<smem>>
    %25 = arith.index_cast %24 : i32 to index
    %c0_12 = arith.constant 0 : index
    %26 = vector.load %arg7[%25, %c0_12] : memref<70x32xf32, #tpu.memory_space<vmem>>, vector<1x32xf32>
    %c0_13 = arith.constant 0 : index
    %c9 = arith.constant 9 : index
    %c0_14 = arith.constant 0 : index
    %27 = vector.load %arg8[%c0_13, %c9, %c0_14] : memref<2x15x32xf32, #tpu.memory_space<vmem>>, vector<1x1x32xf32>
    %28 = vector.shape_cast %27 : vector<1x1x32xf32> to vector<1x32xf32>
    %29 = vector.shape_cast %26 : vector<1x32xf32> to vector<1x1x32xf32>
    tpu.vector_store %arg8[%c0_13, %c9, %c0_14], %29 {strides = array<i32>} : memref<2x15x32xf32, #tpu.memory_space<vmem>>, vector<1x1x32xf32>,
    %c5_15 = arith.constant 5 : index
    %30 = memref.load %arg0[%c5_15] : memref<20xi32, #tpu.memory_space<smem>>
    %31 = arith.index_cast %30 : i32 to index
    %c0_16 = arith.constant 0 : index
    %32 = vector.load %arg7[%31, %c0_16] : memref<70x32xf32, #tpu.memory_space<vmem>>, vector<1x32xf32>
    %c0_17 = arith.constant 0 : index
    %c10 = arith.constant 10 : index
    %c0_18 = arith.constant 0 : index
    %33 = vector.load %arg8[%c0_17, %c10, %c0_18] : memref<2x15x32xf32, #tpu.memory_space<vmem>>, vector<1x1x32xf32>
    %34 = vector.shape_cast %33 : vector<1x1x32xf32> to vector<1x32xf32>
    %35 = vector.shape_cast %32 : vector<1x32xf32> to vector<1x1x32xf32>
    tpu.vector_store %arg8[%c0_17, %c10, %c0_18], %35 {strides = array<i32>} : memref<2x15x32xf32, #tpu.memory_space<vmem>>, vector<1x1x32xf32>,
    %c6_19 = arith.constant 6 : index
    %36 = memref.load %arg0[%c6_19] : memref<20xi32, #tpu.memory_space<smem>>
    %37 = arith.index_cast %36 : i32 to index
    %c0_20 = arith.constant 0 : index
    %38 = vector.load %arg7[%37, %c0_20] : memref<70x32xf32, #tpu.memory_space<vmem>>, vector<1x32xf32>
    %c0_21 = arith.constant 0 : index
    %c11 = arith.constant 11 : index
    %c0_22 = arith.constant 0 : index
    %39 = vector.load %arg8[%c0_21, %c11, %c0_22] : memref<2x15x32xf32, #tpu.memory_space<vmem>>, vector<1x1x32xf32>
    %40 = vector.shape_cast %39 : vector<1x1x32xf32> to vector<1x32xf32>
    %41 = vector.shape_cast %38 : vector<1x32xf32> to vector<1x1x32xf32>
    tpu.vector_store %arg8[%c0_21, %c11, %c0_22], %41 {strides = array<i32>} : memref<2x15x32xf32, #tpu.memory_space<vmem>>, vector<1x1x32xf32>,
    %c7_23 = arith.constant 7 : index
    %42 = memref.load %arg0[%c7_23] : memref<20xi32, #tpu.memory_space<smem>>
    %43 = arith.index_cast %42 : i32 to index
    %c0_24 = arith.constant 0 : index
    %44 = vector.load %arg7[%43, %c0_24] : memref<70x32xf32, #tpu.memory_space<vmem>>, vector<1x32xf32>
    %c0_25 = arith.constant 0 : index
    %c12 = arith.constant 12 : index
    %c0_26 = arith.constant 0 : index
    %45 = vector.load %arg8[%c0_25, %c12, %c0_26] : memref<2x15x32xf32, #tpu.memory_space<vmem>>, vector<1x1x32xf32>
    %46 = vector.shape_cast %45 : vector<1x1x32xf32> to vector<1x32xf32>
    %47 = vector.shape_cast %44 : vector<1x32xf32> to vector<1x1x32xf32>
    tpu.vector_store %arg8[%c0_25, %c12, %c0_26], %47 {strides = array<i32>} : memref<2x15x32xf32, #tpu.memory_space<vmem>>, vector<1x1x32xf32>,
    %c8_27 = arith.constant 8 : index
    %48 = memref.load %arg0[%c8_27] : memref<20xi32, #tpu.memory_space<smem>>
    %49 = arith.index_cast %48 : i32 to index
    %c0_28 = arith.constant 0 : index
    %50 = vector.load %arg7[%49, %c0_28] : memref<70x32xf32, #tpu.memory_space<vmem>>, vector<1x32xf32>
    %c0_29 = arith.constant 0 : index
    %c13 = arith.constant 13 : index
    %c0_30 = arith.constant 0 : index
    %51 = vector.load %arg8[%c0_29, %c13, %c0_30] : memref<2x15x32xf32, #tpu.memory_space<vmem>>, vector<1x1x32xf32>
    %52 = vector.shape_cast %51 : vector<1x1x32xf32> to vector<1x32xf32>
    %53 = vector.shape_cast %50 : vector<1x32xf32> to vector<1x1x32xf32>
    tpu.vector_store %arg8[%c0_29, %c13, %c0_30], %53 {strides = array<i32>} : memref<2x15x32xf32, #tpu.memory_space<vmem>>, vector<1x1x32xf32>,
    %c9_31 = arith.constant 9 : index
    %54 = memref.load %arg0[%c9_31] : memref<20xi32, #tpu.memory_space<smem>>
    %55 = arith.index_cast %54 : i32 to index
    %c0_32 = arith.constant 0 : index
    %56 = vector.load %arg7[%55, %c0_32] : memref<70x32xf32, #tpu.memory_space<vmem>>, vector<1x32xf32>
    %c0_33 = arith.constant 0 : index
    %c14 = arith.constant 14 : index
    %c0_34 = arith.constant 0 : index
    %57 = vector.load %arg8[%c0_33, %c14, %c0_34] : memref<2x15x32xf32, #tpu.memory_space<vmem>>, vector<1x1x32xf32>
    %58 = vector.shape_cast %57 : vector<1x1x32xf32> to vector<1x32xf32>
    %59 = vector.shape_cast %56 : vector<1x32xf32> to vector<1x1x32xf32>
    tpu.vector_store %arg8[%c0_33, %c14, %c0_34], %59 {strides = array<i32>} : memref<2x15x32xf32, #tpu.memory_space<vmem>>, vector<1x1x32xf32>,
    %c10_35 = arith.constant 10 : index
    %60 = memref.load %arg0[%c10_35] : memref<20xi32, #tpu.memory_space<smem>>
    %61 = arith.index_cast %60 : i32 to index
    %c0_36 = arith.constant 0 : index
    %62 = vector.load %arg7[%61, %c0_36] : memref<70x32xf32, #tpu.memory_space<vmem>>, vector<1x32xf32>
    %c1_37 = arith.constant 1 : index
    %c5_38 = arith.constant 5 : index
    %c0_39 = arith.constant 0 : index
    %63 = vector.load %arg8[%c1_37, %c5_38, %c0_39] : memref<2x15x32xf32, #tpu.memory_space<vmem>>, vector<1x1x32xf32>
    %64 = vector.shape_cast %63 : vector<1x1x32xf32> to vector<1x32xf32>
    %65 = vector.shape_cast %62 : vector<1x32xf32> to vector<1x1x32xf32>
    tpu.vector_store %arg8[%c1_37, %c5_38, %c0_39], %65 {strides = array<i32>} : memref<2x15x32xf32, #tpu.memory_space<vmem>>, vector<1x1x32xf32>,
    %c11_40 = arith.constant 11 : index
    %66 = memref.load %arg0[%c11_40] : memref<20xi32, #tpu.memory_space<smem>>
    %67 = arith.index_cast %66 : i32 to index
    %c0_41 = arith.constant 0 : index
    %68 = vector.load %arg7[%67, %c0_41] : memref<70x32xf32, #tpu.memory_space<vmem>>, vector<1x32xf32>
    %c1_42 = arith.constant 1 : index
    %c6_43 = arith.constant 6 : index
    %c0_44 = arith.constant 0 : index
    %69 = vector.load %arg8[%c1_42, %c6_43, %c0_44] : memref<2x15x32xf32, #tpu.memory_space<vmem>>, vector<1x1x32xf32>
    %70 = vector.shape_cast %69 : vector<1x1x32xf32> to vector<1x32xf32>
    %71 = vector.shape_cast %68 : vector<1x32xf32> to vector<1x1x32xf32>
    tpu.vector_store %arg8[%c1_42, %c6_43, %c0_44], %71 {strides = array<i32>} : memref<2x15x32xf32, #tpu.memory_space<vmem>>, vector<1x1x32xf32>,
    %c12_45 = arith.constant 12 : index
    %72 = memref.load %arg0[%c12_45] : memref<20xi32, #tpu.memory_space<smem>>
    %73 = arith.index_cast %72 : i32 to index
    %c0_46 = arith.constant 0 : index
    %74 = vector.load %arg7[%73, %c0_46] : memref<70x32xf32, #tpu.memory_space<vmem>>, vector<1x32xf32>
    %c1_47 = arith.constant 1 : index
    %c7_48 = arith.constant 7 : index
    %c0_49 = arith.constant 0 : index
    %75 = vector.load %arg8[%c1_47, %c7_48, %c0_49] : memref<2x15x32xf32, #tpu.memory_space<vmem>>, vector<1x1x32xf32>
    %76 = vector.shape_cast %75 : vector<1x1x32xf32> to vector<1x32xf32>
    %77 = vector.shape_cast %74 : vector<1x32xf32> to vector<1x1x32xf32>
    tpu.vector_store %arg8[%c1_47, %c7_48, %c0_49], %77 {strides = array<i32>} : memref<2x15x32xf32, #tpu.memory_space<vmem>>, vector<1x1x32xf32>,
    %c13_50 = arith.constant 13 : index
    %78 = memref.load %arg0[%c13_50] : memref<20xi32, #tpu.memory_space<smem>>
    %79 = arith.index_cast %78 : i32 to index
    %c0_51 = arith.constant 0 : index
    %80 = vector.load %arg7[%79, %c0_51] : memref<70x32xf32, #tpu.memory_space<vmem>>, vector<1x32xf32>
    %c1_52 = arith.constant 1 : index
    %c8_53 = arith.constant 8 : index
    %c0_54 = arith.constant 0 : index
    %81 = vector.load %arg8[%c1_52, %c8_53, %c0_54] : memref<2x15x32xf32, #tpu.memory_space<vmem>>, vector<1x1x32xf32>
    %82 = vector.shape_cast %81 : vector<1x1x32xf32> to vector<1x32xf32>
    %83 = vector.shape_cast %80 : vector<1x32xf32> to vector<1x1x32xf32>
    tpu.vector_store %arg8[%c1_52, %c8_53, %c0_54], %83 {strides = array<i32>} : memref<2x15x32xf32, #tpu.memory_space<vmem>>, vector<1x1x32xf32>,
    %c14_55 = arith.constant 14 : index
    %84 = memref.load %arg0[%c14_55] : memref<20xi32, #tpu.memory_space<smem>>
    %85 = arith.index_cast %84 : i32 to index
    %c0_56 = arith.constant 0 : index
    %86 = vector.load %arg7[%85, %c0_56] : memref<70x32xf32, #tpu.memory_space<vmem>>, vector<1x32xf32>
    %c1_57 = arith.constant 1 : index
    %c9_58 = arith.constant 9 : index
    %c0_59 = arith.constant 0 : index
    %87 = vector.load %arg8[%c1_57, %c9_58, %c0_59] : memref<2x15x32xf32, #tpu.memory_space<vmem>>, vector<1x1x32xf32>
    %88 = vector.shape_cast %87 : vector<1x1x32xf32> to vector<1x32xf32>
    %89 = vector.shape_cast %86 : vector<1x32xf32> to vector<1x1x32xf32>
    tpu.vector_store %arg8[%c1_57, %c9_58, %c0_59], %89 {strides = array<i32>} : memref<2x15x32xf32, #tpu.memory_space<vmem>>, vector<1x1x32xf32>,
    %c15 = arith.constant 15 : index
    %90 = memref.load %arg0[%c15] : memref<20xi32, #tpu.memory_space<smem>>
    %91 = arith.index_cast %90 : i32 to index
    %c0_60 = arith.constant 0 : index
    %92 = vector.load %arg7[%91, %c0_60] : memref<70x32xf32, #tpu.memory_space<vmem>>, vector<1x32xf32>
    %c1_61 = arith.constant 1 : index
    %c10_62 = arith.constant 10 : index
    %c0_63 = arith.constant 0 : index
    %93 = vector.load %arg8[%c1_61, %c10_62, %c0_63] : memref<2x15x32xf32, #tpu.memory_space<vmem>>, vector<1x1x32xf32>
    %94 = vector.shape_cast %93 : vector<1x1x32xf32> to vector<1x32xf32>
    %95 = vector.shape_cast %92 : vector<1x32xf32> to vector<1x1x32xf32>
    tpu.vector_store %arg8[%c1_61, %c10_62, %c0_63], %95 {strides = array<i32>} : memref<2x15x32xf32, #tpu.memory_space<vmem>>, vector<1x1x32xf32>,
    %c16 = arith.constant 16 : index
    %96 = memref.load %arg0[%c16] : memref<20xi32, #tpu.memory_space<smem>>
    %97 = arith.index_cast %96 : i32 to index
    %c0_64 = arith.constant 0 : index
    %98 = vector.load %arg7[%97, %c0_64] : memref<70x32xf32, #tpu.memory_space<vmem>>, vector<1x32xf32>
    %c1_65 = arith.constant 1 : index
    %c11_66 = arith.constant 11 : index
    %c0_67 = arith.constant 0 : index
    %99 = vector.load %arg8[%c1_65, %c11_66, %c0_67] : memref<2x15x32xf32, #tpu.memory_space<vmem>>, vector<1x1x32xf32>
    %100 = vector.shape_cast %99 : vector<1x1x32xf32> to vector<1x32xf32>
    %101 = vector.shape_cast %98 : vector<1x32xf32> to vector<1x1x32xf32>
    tpu.vector_store %arg8[%c1_65, %c11_66, %c0_67], %101 {strides = array<i32>} : memref<2x15x32xf32, #tpu.memory_space<vmem>>, vector<1x1x32xf32>,
    %c17 = arith.constant 17 : index
    %102 = memref.load %arg0[%c17] : memref<20xi32, #tpu.memory_space<smem>>
    %103 = arith.index_cast %102 : i32 to index
    %c0_68 = arith.constant 0 : index
    %104 = vector.load %arg7[%103, %c0_68] : memref<70x32xf32, #tpu.memory_space<vmem>>, vector<1x32xf32>
    %c1_69 = arith.constant 1 : index
    %c12_70 = arith.constant 12 : index
    %c0_71 = arith.constant 0 : index
    %105 = vector.load %arg8[%c1_69, %c12_70, %c0_71] : memref<2x15x32xf32, #tpu.memory_space<vmem>>, vector<1x1x32xf32>
    %106 = vector.shape_cast %105 : vector<1x1x32xf32> to vector<1x32xf32>
    %107 = vector.shape_cast %104 : vector<1x32xf32> to vector<1x1x32xf32>
    tpu.vector_store %arg8[%c1_69, %c12_70, %c0_71], %107 {strides = array<i32>} : memref<2x15x32xf32, #tpu.memory_space<vmem>>, vector<1x1x32xf32>,
    %c18 = arith.constant 18 : index
    %108 = memref.load %arg0[%c18] : memref<20xi32, #tpu.memory_space<smem>>
    %109 = arith.index_cast %108 : i32 to index
    %c0_72 = arith.constant 0 : index
    %110 = vector.load %arg7[%109, %c0_72] : memref<70x32xf32, #tpu.memory_space<vmem>>, vector<1x32xf32>
    %c1_73 = arith.constant 1 : index
    %c13_74 = arith.constant 13 : index
    %c0_75 = arith.constant 0 : index
    %111 = vector.load %arg8[%c1_73, %c13_74, %c0_75] : memref<2x15x32xf32, #tpu.memory_space<vmem>>, vector<1x1x32xf32>
    %112 = vector.shape_cast %111 : vector<1x1x32xf32> to vector<1x32xf32>
    %113 = vector.shape_cast %110 : vector<1x32xf32> to vector<1x1x32xf32>
    tpu.vector_store %arg8[%c1_73, %c13_74, %c0_75], %113 {strides = array<i32>} : memref<2x15x32xf32, #tpu.memory_space<vmem>>, vector<1x1x32xf32>,
    %c19 = arith.constant 19 : index
    %114 = memref.load %arg0[%c19] : memref<20xi32, #tpu.memory_space<smem>>
    %115 = arith.index_cast %114 : i32 to index
    %c0_76 = arith.constant 0 : index
    %116 = vector.load %arg7[%115, %c0_76] : memref<70x32xf32, #tpu.memory_space<vmem>>, vector<1x32xf32>
    %c1_77 = arith.constant 1 : index
    %c14_78 = arith.constant 14 : index
    %c0_79 = arith.constant 0 : index
    %117 = vector.load %arg8[%c1_77, %c14_78, %c0_79] : memref<2x15x32xf32, #tpu.memory_space<vmem>>, vector<1x1x32xf32>
    %118 = vector.shape_cast %117 : vector<1x1x32xf32> to vector<1x32xf32>
    %119 = vector.shape_cast %116 : vector<1x32xf32> to vector<1x1x32xf32>
    tpu.vector_store %arg8[%c1_77, %c14_78, %c0_79], %119 {strides = array<i32>} : memref<2x15x32xf32, #tpu.memory_space<vmem>>, vector<1x1x32xf32>,
    %c0_80 = arith.constant 0 : index
    %c0_81 = arith.constant 0 : index
    %120 = vector.load %arg2[%c0_80, %c0_81] : memref<2x32xf32, #tpu.memory_space<vmem>>, vector<2x32xf32>
    %c0_82 = arith.constant 0 : index
    %c0_83 = arith.constant 0 : index
    %121 = vector.load %arg3[%c0_82, %c0_83] : memref<32x16xf32, #tpu.memory_space<vmem>>, vector<32x16xf32>
    %cst = arith.constant dense<0.000000e+00> : vector<2x16xf32>
    %122 = tpu.matmul %120, %121, %cst {dimension_numbers = #tpu.dot_dimension_numbers<[1], [0], [0], [1], [0, 0, 1, 1], [], []>} : vector<2x32xf32>, vector<32x16xf32>, vector<2x16xf32> -> vector<2x16xf32>
    %c0_84 = arith.constant 0 : index
    %c0_85 = arith.constant 0 : index
    %123 = vector.load %arg5[%c0_84, %c0_85] : memref<4x32xf32, #tpu.memory_space<vmem>>, vector<1x16xf32>
    %124 = vector.broadcast %123 : vector<1x16xf32> to vector<2x16xf32>
    %125 = arith.addf %122, %124 : vector<2x16xf32>
    %126 = arith.negf %125 : vector<2x16xf32>
    %127 = math.exp %126 : vector<2x16xf32>
    %cst_86 = arith.constant 1.000000e+00 : f32
    %128 = vector.broadcast %cst_86 : f32 to vector<2x16xf32>
    %129 = arith.addf %128, %127 : vector<2x16xf32>
    %130 = arith.divf %128, %129 : vector<2x16xf32>
    %131 = arith.mulf %125, %130 : vector<2x16xf32>
    %c0_87 = arith.constant 0 : index
    %c0_88 = arith.constant 0 : index
    %132 = vector.load %arg4[%c0_87, %c0_88] : memref<16x32xf32, #tpu.memory_space<vmem>>, vector<16x32xf32>
    %cst_89 = arith.constant dense<0.000000e+00> : vector<2x32xf32>
    %133 = tpu.matmul %131, %132, %cst_89 {dimension_numbers = #tpu.dot_dimension_numbers<[1], [0], [0], [1], [0, 0, 1, 1], [], []>} : vector<2x16xf32>, vector<16x32xf32>, vector<2x32xf32> -> vector<2x32xf32>
    %c1_90 = arith.constant 1 : index
    %c0_91 = arith.constant 0 : index
    %134 = vector.load %arg5[%c1_90, %c0_91] : memref<4x32xf32, #tpu.memory_space<vmem>>, vector<1x32xf32>
    %135 = vector.broadcast %134 : vector<1x32xf32> to vector<2x32xf32>
    %136 = arith.addf %133, %135 : vector<2x32xf32>
    %cst_92 = arith.constant dense<0.000000e+00> : vector<2xf32>
    %137 = vector.multi_reduction <add>, %136, %cst_92 [1] : vector<2x32xf32> to vector<2xf32>
    %138 = vector.shape_cast %137 : vector<2xf32> to vector<2x1xf32>
    %cst_93 = arith.constant 3.200000e+01 : f32
    %139 = vector.broadcast %cst_93 : f32 to vector<2x1xf32>
    %140 = arith.divf %138, %139 : vector<2x1xf32>
    %141 = vector.broadcast %140 : vector<2x1xf32> to vector<2x32xf32>
    %142 = arith.subf %136, %141 : vector<2x32xf32>
    %143 = arith.mulf %142, %142 : vector<2x32xf32>
    %cst_94 = arith.constant dense<0.000000e+00> : vector<2xf32>
    %144 = vector.multi_reduction <add>, %143, %cst_94 [1] : vector<2x32xf32> to vector<2xf32>
    %145 = vector.shape_cast %144 : vector<2xf32> to vector<2x1xf32>
    %cst_95 = arith.constant 3.200000e+01 : f32
    %146 = vector.broadcast %cst_95 : f32 to vector<2x1xf32>
    %147 = arith.divf %145, %146 : vector<2x1xf32>
    %148 = vector.broadcast %140 : vector<2x1xf32> to vector<2x32xf32>
    %149 = arith.subf %136, %148 : vector<2x32xf32>
    %cst_96 = arith.constant 9.99999974E-6 : f32
    %150 = vector.broadcast %cst_96 : f32 to vector<2x1xf32>
    %151 = arith.addf %147, %150 : vector<2x1xf32>
    %152 = math.rsqrt %151 : vector<2x1xf32>
    %153 = vector.broadcast %152 : vector<2x1xf32> to vector<2x32xf32>
    %154 = arith.mulf %149, %153 : vector<2x32xf32>
    %c2_97 = arith.constant 2 : index
    %c0_98 = arith.constant 0 : index
    %155 = vector.load %arg5[%c2_97, %c0_98] : memref<4x32xf32, #tpu.memory_space<vmem>>, vector<1x32xf32>
    %156 = vector.broadcast %155 : vector<1x32xf32> to vector<2x32xf32>
    %157 = arith.mulf %154, %156 : vector<2x32xf32>
    %c3_99 = arith.constant 3 : index
    %c0_100 = arith.constant 0 : index
    %158 = vector.load %arg5[%c3_99, %c0_100] : memref<4x32xf32, #tpu.memory_space<vmem>>, vector<1x32xf32>
    %159 = vector.broadcast %158 : vector<1x32xf32> to vector<2x32xf32>
    %160 = arith.addf %157, %159 : vector<2x32xf32>
    %c0_101 = arith.constant 0 : index
    %161 = memref.load %arg1[%c0_101] : memref<1xf32, #tpu.memory_space<smem>>
    %162 = vector.broadcast %161 : f32 to vector<2x32xf32>
    %163 = arith.mulf %160, %162 : vector<2x32xf32>
    %164 = tpu.transpose %163, [1, 0] : vector<2x32xf32> -> vector<32x2xf32>
    %c0_102 = arith.constant 0 : index
    %c0_103 = arith.constant 0 : index
    %c0_104 = arith.constant 0 : index
    %165 = vector.load %arg6[%c0_102, %c0_103, %c0_104] : memref<5x5x32xf32, #tpu.memory_space<vmem>>, vector<1x5x32xf32>
    %166 = vector.shape_cast %165 : vector<1x5x32xf32> to vector<5x32xf32>
    %cst_105 = arith.constant dense<0.000000e+00> : vector<5x2xf32>
    %167 = tpu.matmul %166, %164, %cst_105 {dimension_numbers = #tpu.dot_dimension_numbers<[1], [0], [0], [1], [0, 0, 1, 1], [], []>} : vector<5x32xf32>, vector<32x2xf32>, vector<5x2xf32> -> vector<5x2xf32>
    %c1_106 = arith.constant 1 : index
    %c0_107 = arith.constant 0 : index
    %c0_108 = arith.constant 0 : index
    %168 = vector.load %arg6[%c1_106, %c0_107, %c0_108] : memref<5x5x32xf32, #tpu.memory_space<vmem>>, vector<1x5x32xf32>
    %169 = vector.shape_cast %168 : vector<1x5x32xf32> to vector<5x32xf32>
    %cst_109 = arith.constant dense<0.000000e+00> : vector<5x2xf32>
    %170 = tpu.matmul %169, %164, %cst_109 {dimension_numbers = #tpu.dot_dimension_numbers<[1], [0], [0], [1], [0, 0, 1, 1], [], []>} : vector<5x32xf32>, vector<32x2xf32>, vector<5x2xf32> -> vector<5x2xf32>
    %c2_110 = arith.constant 2 : index
    %c0_111 = arith.constant 0 : index
    %c0_112 = arith.constant 0 : index
    %171 = vector.load %arg6[%c2_110, %c0_111, %c0_112] : memref<5x5x32xf32, #tpu.memory_space<vmem>>, vector<1x5x32xf32>
    %172 = vector.shape_cast %171 : vector<1x5x32xf32> to vector<5x32xf32>
    %cst_113 = arith.constant dense<0.000000e+00> : vector<5x2xf32>
    %173 = tpu.matmul %172, %164, %cst_113 {dimension_numbers = #tpu.dot_dimension_numbers<[1], [0], [0], [1], [0, 0, 1, 1], [], []>} : vector<5x32xf32>, vector<32x2xf32>, vector<5x2xf32> -> vector<5x2xf32>
    %c3_114 = arith.constant 3 : index
    %c0_115 = arith.constant 0 : index
    %c0_116 = arith.constant 0 : index
    %174 = vector.load %arg6[%c3_114, %c0_115, %c0_116] : memref<5x5x32xf32, #tpu.memory_space<vmem>>, vector<1x5x32xf32>
    %175 = vector.shape_cast %174 : vector<1x5x32xf32> to vector<5x32xf32>
    %cst_117 = arith.constant dense<0.000000e+00> : vector<5x2xf32>
    %176 = tpu.matmul %175, %164, %cst_117 {dimension_numbers = #tpu.dot_dimension_numbers<[1], [0], [0], [1], [0, 0, 1, 1], [], []>} : vector<5x32xf32>, vector<32x2xf32>, vector<5x2xf32> -> vector<5x2xf32>
    %c4_118 = arith.constant 4 : index
    %c0_119 = arith.constant 0 : index
    %c0_120 = arith.constant 0 : index
    %177 = vector.load %arg6[%c4_118, %c0_119, %c0_120] : memref<5x5x32xf32, #tpu.memory_space<vmem>>, vector<1x5x32xf32>
    %178 = vector.shape_cast %177 : vector<1x5x32xf32> to vector<5x32xf32>
    %cst_121 = arith.constant dense<0.000000e+00> : vector<5x2xf32>
    %179 = tpu.matmul %178, %164, %cst_121 {dimension_numbers = #tpu.dot_dimension_numbers<[1], [0], [0], [1], [0, 0, 1, 1], [], []>} : vector<5x32xf32>, vector<32x2xf32>, vector<5x2xf32> -> vector<5x2xf32>
    %180 = arith.maximumf %167, %170 : vector<5x2xf32>
    %181 = arith.maximumf %180, %173 : vector<5x2xf32>
    %182 = arith.maximumf %181, %176 : vector<5x2xf32>
    %183 = arith.maximumf %182, %179 : vector<5x2xf32>
    %184 = arith.subf %167, %183 : vector<5x2xf32>
    %185 = math.exp %184 : vector<5x2xf32>
    %186 = arith.subf %170, %183 : vector<5x2xf32>
    %187 = math.exp %186 : vector<5x2xf32>
    %188 = arith.subf %173, %183 : vector<5x2xf32>
    %189 = math.exp %188 : vector<5x2xf32>
    %190 = arith.subf %176, %183 : vector<5x2xf32>
    %191 = math.exp %190 : vector<5x2xf32>
    %192 = arith.subf %179, %183 : vector<5x2xf32>
    %193 = math.exp %192 : vector<5x2xf32>
    %194 = arith.addf %185, %187 : vector<5x2xf32>
    %195 = arith.addf %194, %189 : vector<5x2xf32>
    %196 = arith.addf %195, %191 : vector<5x2xf32>
    %197 = arith.addf %196, %193 : vector<5x2xf32>
    %198 = tpu.reciprocal %197 : vector<5x2xf32> -> vector<5x2xf32>
    %199 = arith.mulf %185, %198 : vector<5x2xf32>
    %200 = arith.mulf %187, %198 : vector<5x2xf32>
    %201 = arith.mulf %189, %198 : vector<5x2xf32>
    %202 = arith.mulf %191, %198 : vector<5x2xf32>
    %203 = arith.mulf %193, %198 : vector<5x2xf32>
    %204 = vector.extract_strided_slice %199 {offsets = [0, 0], sizes = [5, 1], strides = [1, 1]} : vector<5x2xf32> to vector<5x1xf32>
    %c0_122 = arith.constant 0 : index
    %c0_123 = arith.constant 0 : index
    %c0_124 = arith.constant 0 : index
    %205 = vector.load %arg6[%c0_122, %c0_123, %c0_124] : memref<5x5x32xf32, #tpu.memory_space<vmem>>, vector<1x5x32xf32>
    %206 = vector.shape_cast %205 : vector<1x5x32xf32> to vector<5x32xf32>
    %207 = vector.broadcast %204 : vector<5x1xf32> to vector<5x32xf32>
    %208 = arith.mulf %207, %206 : vector<5x32xf32>
    %209 = vector.extract_strided_slice %200 {offsets = [0, 0], sizes = [5, 1], strides = [1, 1]} : vector<5x2xf32> to vector<5x1xf32>
    %c1_125 = arith.constant 1 : index
    %c0_126 = arith.constant 0 : index
    %c0_127 = arith.constant 0 : index
    %210 = vector.load %arg6[%c1_125, %c0_126, %c0_127] : memref<5x5x32xf32, #tpu.memory_space<vmem>>, vector<1x5x32xf32>
    %211 = vector.shape_cast %210 : vector<1x5x32xf32> to vector<5x32xf32>
    %212 = vector.broadcast %209 : vector<5x1xf32> to vector<5x32xf32>
    %213 = arith.mulf %212, %211 : vector<5x32xf32>
    %214 = arith.addf %208, %213 : vector<5x32xf32>
    %215 = vector.extract_strided_slice %201 {offsets = [0, 0], sizes = [5, 1], strides = [1, 1]} : vector<5x2xf32> to vector<5x1xf32>
    %c2_128 = arith.constant 2 : index
    %c0_129 = arith.constant 0 : index
    %c0_130 = arith.constant 0 : index
    %216 = vector.load %arg6[%c2_128, %c0_129, %c0_130] : memref<5x5x32xf32, #tpu.memory_space<vmem>>, vector<1x5x32xf32>
    %217 = vector.shape_cast %216 : vector<1x5x32xf32> to vector<5x32xf32>
    %218 = vector.broadcast %215 : vector<5x1xf32> to vector<5x32xf32>
    %219 = arith.mulf %218, %217 : vector<5x32xf32>
    %220 = arith.addf %214, %219 : vector<5x32xf32>
    %221 = vector.extract_strided_slice %202 {offsets = [0, 0], sizes = [5, 1], strides = [1, 1]} : vector<5x2xf32> to vector<5x1xf32>
    %c3_131 = arith.constant 3 : index
    %c0_132 = arith.constant 0 : index
    %c0_133 = arith.constant 0 : index
    %222 = vector.load %arg6[%c3_131, %c0_132, %c0_133] : memref<5x5x32xf32, #tpu.memory_space<vmem>>, vector<1x5x32xf32>
    %223 = vector.shape_cast %222 : vector<1x5x32xf32> to vector<5x32xf32>
    %224 = vector.broadcast %221 : vector<5x1xf32> to vector<5x32xf32>
    %225 = arith.mulf %224, %223 : vector<5x32xf32>
    %226 = arith.addf %220, %225 : vector<5x32xf32>
    %227 = vector.extract_strided_slice %203 {offsets = [0, 0], sizes = [5, 1], strides = [1, 1]} : vector<5x2xf32> to vector<5x1xf32>
    %c4_134 = arith.constant 4 : index
    %c0_135 = arith.constant 0 : index
    %c0_136 = arith.constant 0 : index
    %228 = vector.load %arg6[%c4_134, %c0_135, %c0_136] : memref<5x5x32xf32, #tpu.memory_space<vmem>>, vector<1x5x32xf32>
    %229 = vector.shape_cast %228 : vector<1x5x32xf32> to vector<5x32xf32>
    %230 = vector.broadcast %227 : vector<5x1xf32> to vector<5x32xf32>
    %231 = arith.mulf %230, %229 : vector<5x32xf32>
    %232 = arith.addf %226, %231 : vector<5x32xf32>
    %233 = vector.extract_strided_slice %199 {offsets = [0, 1], sizes = [5, 1], strides = [1, 1]} : vector<5x2xf32> to vector<5x1xf32>
    %c0_137 = arith.constant 0 : index
    %c0_138 = arith.constant 0 : index
    %c0_139 = arith.constant 0 : index
    %234 = vector.load %arg6[%c0_137, %c0_138, %c0_139] : memref<5x5x32xf32, #tpu.memory_space<vmem>>, vector<1x5x32xf32>
    %235 = vector.shape_cast %234 : vector<1x5x32xf32> to vector<5x32xf32>
    %236 = vector.broadcast %233 : vector<5x1xf32> to vector<5x32xf32>
    %237 = arith.mulf %236, %235 : vector<5x32xf32>
    %238 = vector.extract_strided_slice %200 {offsets = [0, 1], sizes = [5, 1], strides = [1, 1]} : vector<5x2xf32> to vector<5x1xf32>
    %c1_140 = arith.constant 1 : index
    %c0_141 = arith.constant 0 : index
    %c0_142 = arith.constant 0 : index
    %239 = vector.load %arg6[%c1_140, %c0_141, %c0_142] : memref<5x5x32xf32, #tpu.memory_space<vmem>>, vector<1x5x32xf32>
    %240 = vector.shape_cast %239 : vector<1x5x32xf32> to vector<5x32xf32>
    %241 = vector.broadcast %238 : vector<5x1xf32> to vector<5x32xf32>
    %242 = arith.mulf %241, %240 : vector<5x32xf32>
    %243 = arith.addf %237, %242 : vector<5x32xf32>
    %244 = vector.extract_strided_slice %201 {offsets = [0, 1], sizes = [5, 1], strides = [1, 1]} : vector<5x2xf32> to vector<5x1xf32>
    %c2_143 = arith.constant 2 : index
    %c0_144 = arith.constant 0 : index
    %c0_145 = arith.constant 0 : index
    %245 = vector.load %arg6[%c2_143, %c0_144, %c0_145] : memref<5x5x32xf32, #tpu.memory_space<vmem>>, vector<1x5x32xf32>
    %246 = vector.shape_cast %245 : vector<1x5x32xf32> to vector<5x32xf32>
    %247 = vector.broadcast %244 : vector<5x1xf32> to vector<5x32xf32>
    %248 = arith.mulf %247, %246 : vector<5x32xf32>
    %249 = arith.addf %243, %248 : vector<5x32xf32>
    %250 = vector.extract_strided_slice %202 {offsets = [0, 1], sizes = [5, 1], strides = [1, 1]} : vector<5x2xf32> to vector<5x1xf32>
    %c3_146 = arith.constant 3 : index
    %c0_147 = arith.constant 0 : index
    %c0_148 = arith.constant 0 : index
    %251 = vector.load %arg6[%c3_146, %c0_147, %c0_148] : memref<5x5x32xf32, #tpu.memory_space<vmem>>, vector<1x5x32xf32>
    %252 = vector.shape_cast %251 : vector<1x5x32xf32> to vector<5x32xf32>
    %253 = vector.broadcast %250 : vector<5x1xf32> to vector<5x32xf32>
    %254 = arith.mulf %253, %252 : vector<5x32xf32>
    %255 = arith.addf %249, %254 : vector<5x32xf32>
    %256 = vector.extract_strided_slice %203 {offsets = [0, 1], sizes = [5, 1], strides = [1, 1]} : vector<5x2xf32> to vector<5x1xf32>
    %c4_149 = arith.constant 4 : index
    %c0_150 = arith.constant 0 : index
    %c0_151 = arith.constant 0 : index
    %257 = vector.load %arg6[%c4_149, %c0_150, %c0_151] : memref<5x5x32xf32, #tpu.memory_space<vmem>>, vector<1x5x32xf32>
    %258 = vector.shape_cast %257 : vector<1x5x32xf32> to vector<5x32xf32>
    %259 = vector.broadcast %256 : vector<5x1xf32> to vector<5x32xf32>
    %260 = arith.mulf %259, %258 : vector<5x32xf32>
    %261 = arith.addf %255, %260 : vector<5x32xf32>
    %c0_152 = arith.constant 0 : index
    %c0_153 = arith.constant 0 : index
    %c0_154 = arith.constant 0 : index
    %262 = vector.load %arg8[%c0_152, %c0_153, %c0_154] : memref<2x15x32xf32, #tpu.memory_space<vmem>>, vector<1x5x32xf32>
    %263 = vector.shape_cast %262 : vector<1x5x32xf32> to vector<5x32xf32>
    %264 = vector.shape_cast %232 : vector<5x32xf32> to vector<1x5x32xf32>
    tpu.vector_store %arg8[%c0_152, %c0_153, %c0_154], %264 {strides = array<i32>} : memref<2x15x32xf32, #tpu.memory_space<vmem>>, vector<1x5x32xf32>,
    %c1_155 = arith.constant 1 : index
    %c0_156 = arith.constant 0 : index
    %c0_157 = arith.constant 0 : index
    %265 = vector.load %arg8[%c1_155, %c0_156, %c0_157] : memref<2x15x32xf32, #tpu.memory_space<vmem>>, vector<1x5x32xf32>
    %266 = vector.shape_cast %265 : vector<1x5x32xf32> to vector<5x32xf32>
    %267 = vector.shape_cast %261 : vector<5x32xf32> to vector<1x5x32xf32>
    tpu.vector_store %arg8[%c1_155, %c0_156, %c0_157], %267 {strides = array<i32>} : memref<2x15x32xf32, #tpu.memory_space<vmem>>, vector<1x5x32xf32>,
    return
  }
}

</mosaic_0001>

<llo_original>
// kernel: softembv2_forward.1
$region0: #{softembv2_forward.1}
  #allocation0 [shape = 'u32[]', space=smem, size = 0x4, offset = 0x4, fixed_abs, tag = 'smem constant byte address 0x4 - core index']
  #allocation1 [shape = 'u32[72,128]{1,0:T(1,128)}', space=vmem, size = 0x9000, scoped, tag = 'internal scratch']
  #allocation2 [shape = 'f32[1]{0:T(128)S(6)}', space=smem, size = 0x200, scoped, tag = 'scoped memory for softembv2_forward.1']
  %s0 = inlined_call_operand.vmem [shape: s32[20], index: 0, kind: input, shape index: {}]
  %s1 = inlined_call_operand.<no memory space> [shape: f32[1], index: 1, kind: input, shape index: {}]
  %s2 = inlined_call_operand.vmem [shape: f32[2,32], index: 2, kind: input, shape index: {}]
  %s3 = inlined_call_operand.vmem [shape: f32[32,16], index: 3, kind: input, shape index: {}]
  %s4 = inlined_call_operand.vmem [shape: f32[16,32], index: 4, kind: input, shape index: {}]
  %s5 = inlined_call_operand.vmem [shape: f32[4,32], index: 5, kind: input, shape index: {}]
  %s6 = inlined_call_operand.vmem [shape: f32[5,5,32], index: 6, kind: input, shape index: {}]
  %s7 = inlined_call_operand.vmem [shape: f32[70,32], index: 7, kind: input, shape index: {}]
  %s8 = inlined_call_operand.vmem [shape: f32[2,15,32], index: 8, kind: output, shape index: {}]
  %s9 = sld [smem:[#allocation0]]
  $region46: #{softembv2_forward.1} parent=0
    _
  %s11 = ssub.s32 1, %s9
  %s12 = scalar_select 0, %s11, %s9
  %13 = sst [smem:[#allocation2]] %s1
  $region1: #{softembv2_forward.1} parent=0
    #allocation3 [shape = 'u8[512]{0}', space=smem, size = 0x200, scoped, tag = 'input window, operand 0, single buffered']
    #allocation4 [shape = 's32[1]{0}', space=sflag, size = 0x4, scoped, tag = 'scoped memory for softembv2_forward.1']
    %14 = vsyncpa [#allocation4], 0
    // Predicated region
    $region2: #{softembv2_forward.1} parent=1 // pred_check
      _
    $region3: #{softembv2_forward.1} parent=1 // pred_check_branch
      %16 = sbr.rel (0) target = $region5
    $region4: #{softembv2_forward.1} parent=1 // pred_region
      %18 = vsyncadd [#allocation4], 0
      %s20 = sshll.u32 %s0, 4
      %s21 = int_to_ptr.vmem [resolvable:$true] %s20
      %23 = dma.vmem_to_smem %s21, 16, [#allocation3], [#allocation4]
    $region5: #{softembv2_forward.1} parent=1 // pred_fallthru
      _
    // Predicated region
    $region6: #{softembv2_forward.1} parent=1 // pred_check
      _
    $region7: #{softembv2_forward.1} parent=1 // pred_check_branch
      %25 = sbr.rel (0) target = $region9
    $region8: #{softembv2_forward.1} parent=1 // pred_region
      _
    $region9: #{softembv2_forward.1} parent=1 // pred_fallthru
      _
    // Predicated region
    $region10: #{softembv2_forward.1} parent=1 // pred_check
      _
    $region11: #{softembv2_forward.1} parent=1 // pred_check_branch
      %27 = sbr.rel (0) target = $region13
    $region12: #{softembv2_forward.1} parent=1 // pred_region
      _
    $region13: #{softembv2_forward.1} parent=1 // pred_fallthru
      _
    // Predicated region
    $region14: #{softembv2_forward.1} parent=1 // pred_check
      _
    $region15: #{softembv2_forward.1} parent=1 // pred_check_branch
      %29 = sbr.rel (0) target = $region17
    $region16: #{softembv2_forward.1} parent=1 // pred_region
      _
    $region17: #{softembv2_forward.1} parent=1 // pred_fallthru
      _
    // Predicated region
    $region18: #{softembv2_forward.1} parent=1 // pred_check
      _
    $region19: #{softembv2_forward.1} parent=1 // pred_check_branch
      %31 = sbr.rel (0) target = $region21
    $region20: #{softembv2_forward.1} parent=1 // pred_region
      _
    $region21: #{softembv2_forward.1} parent=1 // pred_fallthru
      _
    // Predicated region
    $region22: #{softembv2_forward.1} parent=1 // pred_check
      _
    $region23: #{softembv2_forward.1} parent=1 // pred_check_branch
      %33 = sbr.rel (0) target = $region25
    $region24: #{softembv2_forward.1} parent=1 // pred_region
      _
    $region25: #{softembv2_forward.1} parent=1 // pred_fallthru
      _
    // Predicated region
    $region26: #{softembv2_forward.1} parent=1 // pred_check
      _
    $region27: #{softembv2_forward.1} parent=1 // pred_check_branch
      %35 = sbr.rel (0) target = $region29
    $region28: #{softembv2_forward.1} parent=1 // pred_region
      _
    $region29: #{softembv2_forward.1} parent=1 // pred_fallthru
      _
    // Predicated region
    $region30: #{softembv2_forward.1} parent=1 // pred_check
      _
    $region31: #{softembv2_forward.1} parent=1 // pred_check_branch
      %37 = sbr.rel (0) target = $region33
    $region32: #{softembv2_forward.1} parent=1 // pred_region
      _
    $region33: #{softembv2_forward.1} parent=1 // pred_fallthru
      _
    // Predicated region
    $region34: #{softembv2_forward.1} parent=1 // pred_check
      _
    $region35: #{softembv2_forward.1} parent=1 // pred_check_branch
      %39 = sbr.rel (0) target = $region37
    $region36: #{softembv2_forward.1} parent=1 // pred_region
      %41 = dma.done [#allocation4], 16
    $region37: #{softembv2_forward.1} parent=1 // pred_fallthru
      _
    %42 = sfence
    %s43 = sld [smem:[#allocation3]]
    %s44 = scalar_lea.vmem %s7, %s43
    %v45 = vld [vmem:[%s44] sm:$0x1]
    %vm46 = vcmask 253952
    %47 = vst.msk [vmem:[%s8 + $0x5] sm:$0x1] %vm46, %v45
    %s48 = sld [smem:[#allocation3 + $0x1]]
    %s49 = scalar_lea.vmem %s7, %s48
    %v50 = vld [vmem:[%s49] sm:$0x1]
    %51 = vst.msk [vmem:[%s8 + $0x6] sm:$0x1] %vm46, %v50
    %s52 = sld [smem:[#allocation3 + $0x2]]
    %s53 = scalar_lea.vmem %s7, %s52
    %v54 = vld [vmem:[%s53] sm:$0x1]
    %55 = vst.msk [vmem:[%s8 + $0x7] sm:$0x1] %vm46, %v54
    %s56 = sld [smem:[#allocation3 + $0x3]]
    %s57 = scalar_lea.vmem %s7, %s56
    %v58 = vld [vmem:[%s57] sm:$0x1]
    %59 = vst.msk [vmem:[%s8 + $0x8] sm:$0x1] %vm46, %v58
    %s60 = sld [smem:[#allocation3 + $0x4]]
    %s61 = scalar_lea.vmem %s7, %s60
    %v62 = vld [vmem:[%s61] sm:$0x1]
    %63 = vst.msk [vmem:[%s8 + $0x9] sm:$0x1] %vm46, %v62
    %s64 = sld [smem:[#allocation3 + $0x5]]
    %s65 = scalar_lea.vmem %s7, %s64
    %v66 = vld [vmem:[%s65] sm:$0x1]
    %67 = vst.msk [vmem:[%s8 + $0xa] sm:$0x1] %vm46, %v66
    %s68 = sld [smem:[#allocation3 + $0x6]]
    %s69 = scalar_lea.vmem %s7, %s68
    %v70 = vld [vmem:[%s69] sm:$0x1]
    %71 = vst.msk [vmem:[%s8 + $0xb] sm:$0x1] %vm46, %v70
    %s72 = sld [smem:[#allocation3 + $0x7]]
    %s73 = scalar_lea.vmem %s7, %s72
    %v74 = vld [vmem:[%s73] sm:$0x1]
    %75 = vst.msk [vmem:[%s8 + $0xc] sm:$0x1] %vm46, %v74
    %s76 = sld [smem:[#allocation3 + $0x8]]
    %s77 = scalar_lea.vmem %s7, %s76
    %v78 = vld [vmem:[%s77] sm:$0x1]
    %79 = vst.msk [vmem:[%s8 + $0xd] sm:$0x1] %vm46, %v78
    %s80 = sld [smem:[#allocation3 + $0x9]]
    %s81 = scalar_lea.vmem %s7, %s80
    %v82 = vld [vmem:[%s81] sm:$0x1]
    %83 = vst.msk [vmem:[%s8 + $0xe] sm:$0x1] %vm46, %v82
    %s84 = sld [smem:[#allocation3 + $0xa]]
    %s85 = scalar_lea.vmem %s7, %s84
    %v86 = vld [vmem:[%s85] sm:$0x1]
    %s87 = scalar_lea.vmem %s8, 16
    %88 = vst.msk [vmem:[%s87 + $0x5] sm:$0x1] %vm46, %v86
    %s89 = sld [smem:[#allocation3 + $0xb]]
    %s90 = scalar_lea.vmem %s7, %s89
    %v91 = vld [vmem:[%s90] sm:$0x1]
    %92 = vst.msk [vmem:[%s87 + $0x6] sm:$0x1] %vm46, %v91
    %s93 = sld [smem:[#allocation3 + $0xc]]
    %s94 = scalar_lea.vmem %s7, %s93
    %v95 = vld [vmem:[%s94] sm:$0x1]
    %96 = vst.msk [vmem:[%s87 + $0x7] sm:$0x1] %vm46, %v95
    %s97 = sld [smem:[#allocation3 + $0xd]]
    %s98 = scalar_lea.vmem %s7, %s97
    %v99 = vld [vmem:[%s98] sm:$0x1]
    %100 = vst.msk [vmem:[%s87 + $0x8] sm:$0x1] %vm46, %v99
    %s101 = sld [smem:[#allocation3 + $0xe]]
    %s102 = scalar_lea.vmem %s7, %s101
    %v103 = vld [vmem:[%s102] sm:$0x1]
    %104 = vst.msk [vmem:[%s87 + $0x9] sm:$0x1] %vm46, %v103
    %s105 = sld [smem:[#allocation3 + $0xf]]
    %s106 = scalar_lea.vmem %s7, %s105
    %v107 = vld [vmem:[%s106] sm:$0x1]
    %108 = vst.msk [vmem:[%s87 + $0xa] sm:$0x1] %vm46, %v107
    %s109 = sld [smem:[#allocation3 + $0x10]]
    %s110 = scalar_lea.vmem %s7, %s109
    %v111 = vld [vmem:[%s110] sm:$0x1]
    %112 = vst.msk [vmem:[%s87 + $0xb] sm:$0x1] %vm46, %v111
    %s113 = sld [smem:[#allocation3 + $0x11]]
    %s114 = scalar_lea.vmem %s7, %s113
    %v115 = vld [vmem:[%s114] sm:$0x1]
    %116 = vst.msk [vmem:[%s87 + $0xc] sm:$0x1] %vm46, %v115
    %s117 = sld [smem:[#allocation3 + $0x12]]
    %s118 = scalar_lea.vmem %s7, %s117
    %v119 = vld [vmem:[%s118] sm:$0x1]
    %120 = vst.msk [vmem:[%s87 + $0xd] sm:$0x1] %vm46, %v119
    %s121 = sld [smem:[#allocation3 + $0x13]]
    %s122 = scalar_lea.vmem %s7, %s121
    %v123 = vld [vmem:[%s122] sm:$0x1]
    %124 = vst.msk [vmem:[%s87 + $0xe] sm:$0x1] %vm46, %v123
    %v125 = vld [vmem:[%s2] sm:$0x3]
    %v126 = vld [vmem:[%s3] sm:$0xff]
    %v127 = vld [vmem:[%s3 + $0x8] sm:$0xff]
    %v128 = vld [vmem:[%s3 + $0x10] sm:$0xff]
    %v129 = vld [vmem:[%s3 + $0x18] sm:$0xff]
    %v130 = vld [vmem:[%s5] sm:$0x1]
    %v131 = vperm.slane %v130, 0
    %vm132 = vcmask 261120
    %v134 = vsel %vm132, %v125, 0
    %136 = vmatpush.msra.mxu0 0.0
    %137 = vmatpush.msra.mxu0 0.0
    %138 = vmatpush.msra.mxu0 0.0
    %139 = vmatpush.msra.mxu0 0.0
    %140 = vmatpush.msra.mxu0 0.0
    %141 = vmatpush.msra.mxu0 0.0
    %142 = vmatpush.msra.mxu0 0.0
    %143 = vmatpush.msra.mxu0 0.0
    %144 = vmatpush.msra.mxu0 0.0
    %145 = vmatpush.msra.mxu0 0.0
    %146 = vmatpush.msra.mxu0 0.0
    %147 = vmatpush.msra.mxu0 0.0
    %148 = vmatpush.msra.mxu0 %v129
    %149 = vmatpush.msra.mxu0 %v128
    %150 = vmatpush.msra.mxu0 %v127
    %151 = vmatpush.msra.mxu0 %v126
    %152 = vmatmul.f32.gmra.mxu0 %v134
    %v153 = vpop.f32.mrf.mxu0
    %v154 = vadd.f32 %v131, %v153
    %155 = vdwg.mxu0
    %v156 = vxor.u32 %v154, 2147483648
    %v157 = vmul.f32 %v156, 1.442695
    %v158 = vpow.pop %v157
    %v159 = vadd.f32 %v158, 1.0
    %v160 = vrcp.pop %v159
    %v161 = vmul.f32 %v159, %v160
    %v162 = vsub.f32 1.0, %v161
    %v163 = vmul.f32 %v160, %v162
    %v164 = vadd.f32 %v160, %v163
    %vm165 = vweird.f32 %v159
    %vm166 = vweird.f32 %v160
    %vm167 = vmor %vm165, %vm166
    %v168 = vsel %vm167, %v160, %v164
    %v169 = vand.u32 2147483647, %v159
    %vm170 = vcmp.eq.f32.partialorder %v169, 8.507059e+37
    %v171 = vand.u32 %v159, 2147483648
    %v172 = vor.u32 1.1754944e-38, %v171
    %v173 = vsel %vm170, %v172, %v168
    %v174 = vmul.f32 1.0, %v173
    %v175 = vmul.f32 %v154, %v174
    %v176 = vld [vmem:[%s4] sm:$0xff]
    %v177 = vld [vmem:[%s4 + $0x8] sm:$0xff]
    %v178 = vld [vmem:[%s5 + $0x1] sm:$0x1]
    %v179 = vperm.slane %v178, 0
    %vm180 = vcmask 130048
    %v182 = vsel %vm180, %v175, 0
    %184 = vmatpush.msra.mxu0 0.0
    %185 = vmatpush.msra.mxu0 0.0
    %186 = vmatpush.msra.mxu0 0.0
    %187 = vmatpush.msra.mxu0 0.0
    %188 = vmatpush.msra.mxu0 0.0
    %189 = vmatpush.msra.mxu0 0.0
    %190 = vmatpush.msra.mxu0 0.0
    %191 = vmatpush.msra.mxu0 0.0
    %192 = vmatpush.msra.mxu0 0.0
    %193 = vmatpush.msra.mxu0 0.0
    %194 = vmatpush.msra.mxu0 0.0
    %195 = vmatpush.msra.mxu0 0.0
    %196 = vmatpush.msra.mxu0 0.0
    %197 = vmatpush.msra.mxu0 0.0
    %198 = vmatpush.msra.mxu0 %v177
    %199 = vmatpush.msra.mxu0 %v176
    %200 = vmatmul.f32.gmra.mxu0 %v182
    %v201 = vpop.f32.mrf.mxu0
    %v202 = vadd.f32 %v179, %v201
    %203 = vdwg.mxu0
    %vm204 = vcmask 254976
    %v205 = vsel %vm204, %v202, 0.0
    %206 = vadd.xlane.f32.xlu0 %v205
    %v207 = vpop.xlane.xlu0 %206
    %v208 = vrcp.pop 32.0
    %v209 = vmul.f32 32.0, %v208
    %v210 = vsub.f32 1.0, %v209
    %v211 = vmul.f32 %v208, %v210
    %v212 = vadd.f32 %v208, %v211
    %vm213 = vweird.f32 %v208
    %v214 = vsel %vm213, %v208, %v212
    %v215 = vmul.f32 %v207, %v214
    %v216 = vsub.f32 %v202, %v215
    %v217 = vmul.f32 %v216, %v216
    %v218 = vsel %vm204, %v217, 0.0
    %219 = vadd.xlane.f32.xlu0 %v218
    %v220 = vpop.xlane.xlu0 %219
    %v221 = vmul.f32 %v220, %v214
    %v222 = vadd.f32 %v221, 1e-05
    %v223 = vrsqrt.pop %v222
    %v224 = vmul.f32 %v223, %v222
    %v225 = vmul.f32 %v224, %v223
    %v226 = vmul.f32 0.5, %v225
    %v227 = vsub.f32 1.5, %v226
    %v228 = vmul.f32 %v223, %v227
    %vm229 = vweird.f32 %v222
    %vm230 = vweird.f32 %v223
    %vm231 = vmor %vm229, %vm230
    %v232 = vsel %vm231, %v223, %v228
    %v233 = vmul.f32 %v216, %v232
    %v234 = vld [vmem:[%s5 + $0x2] sm:$0x1]
    %v235 = vperm.slane %v234, 0
    %v236 = vmul.f32 %v233, %v235
    %v237 = vld [vmem:[%s5 + $0x3] sm:$0x1]
    %v238 = vperm.slane %v237, 0
    %v239 = vadd.f32 %v236, %v238
    %s240 = sld [smem:[#allocation2]]
    %v241 = vstv %s240
    %v242 = vmul.f32 %v239, %v241
    %v243 = vld [vmem:[%s6] sm:$0x1f]
    %v245 = vsel %vm132, %v243, 0
    %v248 = vsel %vm132, %v242, 0
    %250 = vmatpush.xpose.msra.mxu0 0.0
    %251 = vmatpush.xpose.msra.mxu0 0.0
    %252 = vmatpush.xpose.msra.mxu0 0.0
    %253 = vmatpush.xpose.msra.mxu0 0.0
    %254 = vmatpush.xpose.msra.mxu0 0.0
    %255 = vmatpush.xpose.msra.mxu0 0.0
    %256 = vmatpush.xpose.msra.mxu0 0.0
    %257 = vmatpush.xpose.msra.mxu0 0.0
    %258 = vmatpush.xpose.msra.mxu0 0.0
    %259 = vmatpush.xpose.msra.mxu0 0.0
    %260 = vmatpush.xpose.msra.mxu0 0.0
    %261 = vmatpush.xpose.msra.mxu0 0.0
    %262 = vmatpush.xpose.msra.mxu0 0.0
    %263 = vmatpush.xpose.msra.mxu0 0.0
    %264 = vmatpush.xpose.msra.mxu0 0.0
    %265 = vmatpush.xpose.msra.mxu0 %v248
    %266 = vmatmul.f32.gmra.mxu0 %v245
    %v267 = vpop.f32.mrf.mxu0
    %v268 = vadd.f32 0.0, %v267
    %269 = vdwg.mxu0
    %s270 = scalar_lea.vmem %s6, 8
    %v271 = vld [vmem:[%s270] sm:$0x1f]
    %v273 = vsel %vm132, %v271, 0
    %275 = vmatpush.xpose.msra.mxu0 0.0
    %276 = vmatpush.xpose.msra.mxu0 0.0
    %277 = vmatpush.xpose.msra.mxu0 0.0
    %278 = vmatpush.xpose.msra.mxu0 0.0
    %279 = vmatpush.xpose.msra.mxu0 0.0
    %280 = vmatpush.xpose.msra.mxu0 0.0
    %281 = vmatpush.xpose.msra.mxu0 0.0
    %282 = vmatpush.xpose.msra.mxu0 0.0
    %283 = vmatpush.xpose.msra.mxu0 0.0
    %284 = vmatpush.xpose.msra.mxu0 0.0
    %285 = vmatpush.xpose.msra.mxu0 0.0
    %286 = vmatpush.xpose.msra.mxu0 0.0
    %287 = vmatpush.xpose.msra.mxu0 0.0
    %288 = vmatpush.xpose.msra.mxu0 0.0
    %289 = vmatpush.xpose.msra.mxu0 0.0
    %290 = vmatpush.xpose.msra.mxu0 %v248
    %291 = vmatmul.f32.gmra.mxu0 %v273
    %v292 = vpop.f32.mrf.mxu0
    %v293 = vadd.f32 0.0, %v292
    %294 = vdwg.mxu0
    %s295 = scalar_lea.vmem %s6, 16
    %v296 = vld [vmem:[%s295] sm:$0x1f]
    %v298 = vsel %vm132, %v296, 0
    %300 = vmatpush.xpose.msra.mxu0 0.0
    %301 = vmatpush.xpose.msra.mxu0 0.0
    %302 = vmatpush.xpose.msra.mxu0 0.0
    %303 = vmatpush.xpose.msra.mxu0 0.0
    %304 = vmatpush.xpose.msra.mxu0 0.0
    %305 = vmatpush.xpose.msra.mxu0 0.0
    %306 = vmatpush.xpose.msra.mxu0 0.0
    %307 = vmatpush.xpose.msra.mxu0 0.0
    %308 = vmatpush.xpose.msra.mxu0 0.0
    %309 = vmatpush.xpose.msra.mxu0 0.0
    %310 = vmatpush.xpose.msra.mxu0 0.0
    %311 = vmatpush.xpose.msra.mxu0 0.0
    %312 = vmatpush.xpose.msra.mxu0 0.0
    %313 = vmatpush.xpose.msra.mxu0 0.0
    %314 = vmatpush.xpose.msra.mxu0 0.0
    %315 = vmatpush.xpose.msra.mxu0 %v248
    %316 = vmatmul.f32.gmra.mxu0 %v298
    %v317 = vpop.f32.mrf.mxu0
    %v318 = vadd.f32 0.0, %v317
    %319 = vdwg.mxu0
    %s320 = scalar_lea.vmem %s6, 24
    %v321 = vld [vmem:[%s320] sm:$0x1f]
    %v323 = vsel %vm132, %v321, 0
    %325 = vmatpush.xpose.msra.mxu0 0.0
    %326 = vmatpush.xpose.msra.mxu0 0.0
    %327 = vmatpush.xpose.msra.mxu0 0.0
    %328 = vmatpush.xpose.msra.mxu0 0.0
    %329 = vmatpush.xpose.msra.mxu0 0.0
    %330 = vmatpush.xpose.msra.mxu0 0.0
    %331 = vmatpush.xpose.msra.mxu0 0.0
    %332 = vmatpush.xpose.msra.mxu0 0.0
    %333 = vmatpush.xpose.msra.mxu0 0.0
    %334 = vmatpush.xpose.msra.mxu0 0.0
    %335 = vmatpush.xpose.msra.mxu0 0.0
    %336 = vmatpush.xpose.msra.mxu0 0.0
    %337 = vmatpush.xpose.msra.mxu0 0.0
    %338 = vmatpush.xpose.msra.mxu0 0.0
    %339 = vmatpush.xpose.msra.mxu0 0.0
    %340 = vmatpush.xpose.msra.mxu0 %v248
    %341 = vmatmul.f32.gmra.mxu0 %v323
    %v342 = vpop.f32.mrf.mxu0
    %v343 = vadd.f32 0.0, %v342
    %344 = vdwg.mxu0
    %s345 = scalar_lea.vmem %s6, 32
    %v346 = vld [vmem:[%s345] sm:$0x1f]
    %v348 = vsel %vm132, %v346, 0
    %350 = vmatpush.xpose.msra.mxu0 0.0
    %351 = vmatpush.xpose.msra.mxu0 0.0
    %352 = vmatpush.xpose.msra.mxu0 0.0
    %353 = vmatpush.xpose.msra.mxu0 0.0
    %354 = vmatpush.xpose.msra.mxu0 0.0
    %355 = vmatpush.xpose.msra.mxu0 0.0
    %356 = vmatpush.xpose.msra.mxu0 0.0
    %357 = vmatpush.xpose.msra.mxu0 0.0
    %358 = vmatpush.xpose.msra.mxu0 0.0
    %359 = vmatpush.xpose.msra.mxu0 0.0
    %360 = vmatpush.xpose.msra.mxu0 0.0
    %361 = vmatpush.xpose.msra.mxu0 0.0
    %362 = vmatpush.xpose.msra.mxu0 0.0
    %363 = vmatpush.xpose.msra.mxu0 0.0
    %364 = vmatpush.xpose.msra.mxu0 0.0
    %365 = vmatpush.xpose.msra.mxu0 %v248
    %366 = vmatmul.f32.gmra.mxu0 %v348
    %v367 = vpop.f32.mrf.mxu0
    %v368 = vadd.f32 0.0, %v367
    %369 = vdwg.mxu0
    %v370 = vmax.f32 %v268, %v293
    %v371 = vmax.f32 %v370, %v318
    %v372 = vmax.f32 %v371, %v343
    %v373 = vmax.f32 %v372, %v368
    %v374 = vsub.f32 %v268, %v373
    %v375 = vmul.f32 %v374, 1.442695
    %v376 = vpow.pop %v375
    %v377 = vsub.f32 %v293, %v373
    %v378 = vmul.f32 %v377, 1.442695
    %v379 = vpow.pop %v378
    %v380 = vsub.f32 %v318, %v373
    %v381 = vmul.f32 %v380, 1.442695
    %v382 = vpow.pop %v381
    %v383 = vsub.f32 %v343, %v373
    %v384 = vmul.f32 %v383, 1.442695
    %v385 = vpow.pop %v384
    %v386 = vsub.f32 %v368, %v373
    %v387 = vmul.f32 %v386, 1.442695
    %v388 = vpow.pop %v387
    %v389 = vadd.f32 %v376, %v379
    %v390 = vadd.f32 %v389, %v382
    %v391 = vadd.f32 %v390, %v385
    %v392 = vadd.f32 %v391, %v388
    %v393 = vrcp.pop %v392
    %v394 = vmul.f32 %v392, %v393
    %v395 = vsub.f32 1.0, %v394
    %v396 = vmul.f32 %v393, %v395
    %v397 = vadd.f32 %v393, %v396
    %vm398 = vweird.f32 %v392
    %vm399 = vweird.f32 %v393
    %vm400 = vmor %vm398, %vm399
    %v401 = vsel %vm400, %v393, %v397
    %v402 = vand.u32 2147483647, %v392
    %vm403 = vcmp.eq.f32.partialorder %v402, 8.507059e+37
    %v404 = vand.u32 %v392, 2147483648
    %v405 = vor.u32 1.1754944e-38, %v404
    %v406 = vsel %vm403, %v405, %v401
    %v407 = vmul.f32 %v376, %v406
    %v408 = vmul.f32 %v379, %v406
    %v409 = vmul.f32 %v382, %v406
    %v410 = vmul.f32 %v385, %v406
    %v411 = vmul.f32 %v388, %v406
    %413 = vset.pattern.permute.xlu0 0
    %414 = vperm.xlu0 %413, %v407
    %v415 = vpop.permute.xlu0 %414
    %v417 = vmul.f32 %v415, %v243
    %419 = vset.pattern.permute.xlu0 0
    %420 = vperm.xlu0 %419, %v408
    %v421 = vpop.permute.xlu0 %420
    %v423 = vmul.f32 %v421, %v271
    %v424 = vadd.f32 %v417, %v423
    %426 = vset.pattern.permute.xlu0 0
    %427 = vperm.xlu0 %426, %v409
    %v428 = vpop.permute.xlu0 %427
    %v430 = vmul.f32 %v428, %v296
    %v431 = vadd.f32 %v424, %v430
    %433 = vset.pattern.permute.xlu0 0
    %434 = vperm.xlu0 %433, %v410
    %v435 = vpop.permute.xlu0 %434
    %v437 = vmul.f32 %v435, %v321
    %v438 = vadd.f32 %v431, %v437
    %440 = vset.pattern.permute.xlu0 0
    %441 = vperm.xlu0 %440, %v411
    %v442 = vpop.permute.xlu0 %441
    %v444 = vmul.f32 %v442, %v346
    %v445 = vadd.f32 %v438, %v444
    %446 = vset.pattern.permute.xlu0 1
    %447 = vperm.xlu0 %446, %v407
    %v448 = vpop.permute.xlu0 %447
    %v450 = vmul.f32 %v448, %v243
    %451 = vset.pattern.permute.xlu0 1
    %452 = vperm.xlu0 %451, %v408
    %v453 = vpop.permute.xlu0 %452
    %v455 = vmul.f32 %v453, %v271
    %v456 = vadd.f32 %v450, %v455
    %457 = vset.pattern.permute.xlu0 1
    %458 = vperm.xlu0 %457, %v409
    %v459 = vpop.permute.xlu0 %458
    %v461 = vmul.f32 %v459, %v296
    %v462 = vadd.f32 %v456, %v461
    %463 = vset.pattern.permute.xlu0 1
    %464 = vperm.xlu0 %463, %v410
    %v465 = vpop.permute.xlu0 %464
    %v467 = vmul.f32 %v465, %v321
    %v468 = vadd.f32 %v462, %v467
    %469 = vset.pattern.permute.xlu0 1
    %470 = vperm.xlu0 %469, %v411
    %v471 = vpop.permute.xlu0 %470
    %v473 = vmul.f32 %v471, %v346
    %v474 = vadd.f32 %v468, %v473
    %vm475 = vcmask 258048
    %476 = vst.msk [vmem:[%s8] sm:$0x1f] %vm475, %v445
    %477 = vst.msk [vmem:[%s87] sm:$0x1f] %vm475, %v474
    // Predicated region
    $region38: #{softembv2_forward.1} parent=1 // pred_check
      _
    $region39: #{softembv2_forward.1} parent=1 // pred_check_branch
      %479 = sbr.rel (0) target = $region41
    $region40: #{softembv2_forward.1} parent=1 // pred_region
      _
    $region41: #{softembv2_forward.1} parent=1 // pred_fallthru
      _
    // Predicated region
    $region42: #{softembv2_forward.1} parent=1 // pred_check
      _
    $region43: #{softembv2_forward.1} parent=1 // pred_check_branch
      %481 = sbr.rel (0) target = $region45
    $region44: #{softembv2_forward.1} parent=1 // pred_region
      _
    $region45: #{softembv2_forward.1} parent=1 // pred_fallthru
      _
    %482 = vsyncpa [#allocation4], 1

</llo_original>
